<compile_context>
chip_gen: v5e
topology: v5e:2x2
jax: 0.10.0
libtpu: 0.0.40
codegen_flags: <defaults>
</compile_context>

<pallas_src>
import math

import jax
import jax.numpy as jnp
from jax.experimental import pallas as pl
from jax.experimental.pallas import tpu as pltpu

MAX_PERIOD = 1000.0  # matches the reference timestep_embedding default (max_period=1000)


# --------------------------------------------------------------------------- #
# Kernel
# --------------------------------------------------------------------------- #
def _prep_kernel(temb_ref, in_img_ref, ref_img_ref, sk_img_out_ref, ref_out_ref):
    """One (batch-tile, channel) grid step.

    All refs are lane-dense (tb, H*W) slabs.  Adds the time embedding to one
    channel slab of `input_image` (skeleton-encoder input, image half) and of
    `ref_image` (reference-encoder input).  No pass-through copies.
    """
    temb = temb_ref[...]                                              # (tb, D)
    sk_img_out_ref[...] = (in_img_ref[...] + temb).astype(sk_img_out_ref.dtype)
    ref_out_ref[...] = (ref_img_ref[...] + temb).astype(ref_out_ref.dtype)


# --------------------------------------------------------------------------- #
# Wrapper
# --------------------------------------------------------------------------- #
def _timestep_embedding(timestep, dim):
    """Sinusoidal embedding (hoisted out of the kernel; t-dependent part is tiny)."""
    half = dim // 2
    freqs = jnp.exp(
        -math.log(MAX_PERIOD) * jnp.arange(half, dtype=jnp.float32) / half
    )
    args = timestep.astype(jnp.float32)[:, None] * freqs[None, :]
    return jnp.concatenate([jnp.cos(args), jnp.sin(args)], axis=-1)  # (B, dim)


def _choose_tb(B, D, *, n_streams=5, budget_bytes=8 << 20, cap=512):
    """Batch-tile size.

    Sublane-aware accounting: each grid step touches `n_streams` lane-dense
    (tb, D) f32 slabs (temb + 2 image inputs + 2 outputs), double-buffered.
    tb is a multiple of 8 (full sublanes), capped at the ~bandwidth knee, and
    the 8 MiB budget keeps the working set inside default scoped VMEM on
    v5e / v6e / v7x (v7x has only 64 MiB physical VMEM per TC).
    """
    if B <= 8:
        return B                                     # block == full dim, always legal
    per_row = n_streams * D * 4                      # f32 bytes per batch row / step
    tb = (budget_bytes // (2 * per_row)) // 8 * 8    # x2 double buffering
    tb = max(8, min(cap, tb))
    return min(tb, B)                                # ragged last step is masked by Pallas


def generator_forward(ref_image, input_image, input_skeleton, timestep, *,
                      tb=None, out_dtype=jnp.float32):
    """Pallas version of the specified parts of Generator.forward.

    ref_image:      (B, 3, H, W) float32
    input_image:    (B, 3, H, W) float32
    input_skeleton: (B, semantic_dim, H, W) float32  (NOT streamed through the kernel)
    timestep:       (B,) float32
    """
    B, C, H, W = ref_image.shape
    assert input_image.shape == (B, C, H, W)
    D = H * W
    assert D % 2 == 0, "embedding dim (H*W) must be even (view(b,1,h,w) requires it)"
    assert D % 128 == 0, "H*W must be a multiple of 128 for lane-dense tiling"

    # Lane-dense 2-D views (free contiguous reshapes at the XLA level).
    in2 = input_image.reshape(B, C * D).astype(jnp.float32)
    ref2 = ref_image.reshape(B, C * D).astype(jnp.float32)

    # Review option (a): precompute the (B, D) embedding once, lane-dense.
    temb = _timestep_embedding(timestep, D)

    if tb is None:
        tb = _choose_tb(B, D)
    grid = (pl.cdiv(B, tb), C)       # channel axis guarantees >= 2 parallel steps

    img_spec = pl.BlockSpec((tb, D), lambda i, c: (i, c))    # c-th D-wide lane slab
    temb_spec = pl.BlockSpec((tb, D), lambda i, c: (i, 0))   # same block for all c

    out_shape = (
        jax.ShapeDtypeStruct((B, C * D), out_dtype),   # input_image + temb
        jax.ShapeDtypeStruct((B, C * D), out_dtype),   # ref_image + temb
    )

    sk_img_flat, ref_flat = pl.pallas_call(
        _prep_kernel,
        out_shape=out_shape,
        grid=grid,
        in_specs=[temb_spec, img_spec, img_spec],
        out_specs=(img_spec, img_spec),
        compiler_params=pltpu.CompilerParams(
            dimension_semantics=("parallel", "parallel"),
        ),
    )(temb, in2, ref2)

    # TODO(synk): skeleton_encoder / reference_encoder / target_image_renderer
    # are undefined in the reference source.  The torch.cat with input_skeleton
    # is deferred (pure pass-through -> wasted HBM bandwidth inside a kernel);
    # use assemble_skeleton_encoder_input() if the concatenated tensor is needed.
    return {
        "skeleton_encoder_input_image": sk_img_flat.reshape(B, C, H, W),
        "skeleton_encoder_input_skeleton": input_skeleton,
        "reference_encoder_input": ref_flat.reshape(B, C, H, W),
        "info": {},
    }


def assemble_skeleton_encoder_input(outputs):
    """Materialize torch.cat([input_image + temb, input_skeleton], dim=1)."""
    return jnp.concatenate(
        [outputs["skeleton_encoder_input_image"],
         outputs["skeleton_encoder_input_skeleton"].astype(
             outputs["skeleton_encoder_input_image"].dtype)],
        axis=1,
    )


# --------------------------------------------------------------------------- #
# Pure-JAX reference (validation only)
# --------------------------------------------------------------------------- #
def _reference_jax(ref_image, input_image, input_skeleton, timestep):
    B, C, H, W = ref_image.shape
    dim = H * W
    half = dim // 2
    freqs = jnp.exp(-math.log(MAX_PERIOD) * jnp.arange(half, dtype=jnp.float32) / half)
    args = timestep.astype(jnp.float32)[:, None] * freqs[None]
    emb = jnp.concatenate([jnp.cos(args), jnp.sin(args)], axis=-1)   # (B, dim)
    temb = emb.reshape(B, 1, H, W)
    sk_in = jnp.concatenate([input_image + temb, input_skeleton], axis=1)
    ref_in = ref_image + temb
    return sk_in, ref_in


if __name__ == "__main__":
    key = jax.random.PRNGKey(0)
    k1, k2, k3, k4 = jax.random.split(key, 4)

    B, C, H, W = 2, 3, 16, 16
    semantic_dim = 4

    ref_image = jax.random.normal(k1, (B, C, H, W), dtype=jnp.float32)
    input_image = jax.random.normal(k2, (B, C, H, W), dtype=jnp.float32)
    input_skeleton = jax.random.normal(k3, (B, semantic_dim, H, W), dtype=jnp.float32)
    timestep = jax.random.uniform(k4, (B,), dtype=jnp.float32) * 100.0

    out = generator_forward(ref_image, input_image, input_skeleton, timestep)
    jax.block_until_ready(out)

    # Validate against the pure-JAX reference.
    sk_ref, ref_ref = _reference_jax(ref_image, input_image, input_skeleton, timestep)
    sk_got = assemble_skeleton_encoder_input(out)
    assert jnp.allclose(sk_got, sk_ref, atol=1e-5, rtol=1e-5)
    assert jnp.allclose(out["reference_encoder_input"], ref_ref, atol=1e-5, rtol=1e-5)

    print("KERNEL_OK")
</pallas_src>

<mosaic_0001>
module attributes {stable_mosaic.version = 11 : i64} {
  func.func @_prep_kernel(%arg0: i32, %arg1: i32, %arg2: memref<2x256xf32, #tpu.memory_space<vmem>>, %arg3: memref<2x256xf32, #tpu.memory_space<vmem>>, %arg4: memref<2x256xf32, #tpu.memory_space<vmem>>, %arg5: memref<2x256xf32, #tpu.memory_space<vmem>>, %arg6: memref<2x256xf32, #tpu.memory_space<vmem>>) attributes {dimension_semantics = [#tpu.dimension_semantics<parallel>, #tpu.dimension_semantics<parallel>], iteration_bounds = array<i64: 1, 3>, scalar_prefetch = 0 : i64, scratch_operands = 0 : i64, tpu.core_type = #tpu.core_type<tc>, window_params = [{transform_indices = @transform_0, window_bounds = array<i64: 2, 256>}, {transform_indices = @transform_1, window_bounds = array<i64: 2, 256>}, {transform_indices = @transform_2, window_bounds = array<i64: 2, 256>}, {transform_indices = @transform_3, window_bounds = array<i64: 2, 256>}, {transform_indices = @transform_4, window_bounds = array<i64: 2, 256>}]} {
    %c0 = arith.constant 0 : index
    %c0_0 = arith.constant 0 : index
    %0 = vector.load %arg2[%c0, %c0_0] : memref<2x256xf32, #tpu.memory_space<vmem>>, vector<2x256xf32>
    %c0_1 = arith.constant 0 : index
    %c0_2 = arith.constant 0 : index
    %1 = vector.load %arg3[%c0_1, %c0_2] : memref<2x256xf32, #tpu.memory_space<vmem>>, vector<2x256xf32>
    %2 = arith.addf %1, %0 : vector<2x256xf32>
    %c0_3 = arith.constant 0 : index
    %c0_4 = arith.constant 0 : index
    %3 = vector.load %arg5[%c0_3, %c0_4] : memref<2x256xf32, #tpu.memory_space<vmem>>, vector<2x256xf32>
    tpu.vector_store %arg5[%c0_3, %c0_4], %2 {strides = array<i32>} : memref<2x256xf32, #tpu.memory_space<vmem>>, vector<2x256xf32>,
    %c0_5 = arith.constant 0 : index
    %c0_6 = arith.constant 0 : index
    %4 = vector.load %arg4[%c0_5, %c0_6] : memref<2x256xf32, #tpu.memory_space<vmem>>, vector<2x256xf32>
    %5 = arith.addf %4, %0 : vector<2x256xf32>
    %c0_7 = arith.constant 0 : index
    %c0_8 = arith.constant 0 : index
    %6 = vector.load %arg6[%c0_7, %c0_8] : memref<2x256xf32, #tpu.memory_space<vmem>>, vector<2x256xf32>
    tpu.vector_store %arg6[%c0_7, %c0_8], %5 {strides = array<i32>} : memref<2x256xf32, #tpu.memory_space<vmem>>, vector<2x256xf32>,
    return
  }
  func.func @transform_0(%arg0: i32, %arg1: i32) -> (i32, i32) {
    %c0_i32 = arith.constant 0 : i32
    %c0_i32_0 = arith.constant 0 : i32
    return %arg0, %c0_i32 : i32, i32
  }
  func.func @transform_1(%arg0: i32, %arg1: i32) -> (i32, i32) {
    %c0_i32 = arith.constant 0 : i32
    return %arg0, %arg1 : i32, i32
  }
  func.func @transform_2(%arg0: i32, %arg1: i32) -> (i32, i32) {
    %c0_i32 = arith.constant 0 : i32
    return %arg0, %arg1 : i32, i32
  }
  func.func @transform_3(%arg0: i32, %arg1: i32) -> (i32, i32) {
    %c0_i32 = arith.constant 0 : i32
    return %arg0, %arg1 : i32, i32
  }
  func.func @transform_4(%arg0: i32, %arg1: i32) -> (i32, i32) {
    %c0_i32 = arith.constant 0 : i32
    return %arg0, %arg1 : i32, i32
  }
}

</mosaic_0001>

<llo_original>
// kernel: tpu_custom_call.1
$region0: #{tpu_custom_call.1}
  #allocation0 [shape = 'u32[]', space=smem, size = 0x4, offset = 0x4, fixed_abs, tag = 'smem constant byte address 0x4 - core index']
  #allocation1 [shape = 'u32[72,128]{1,0:T(1,128)}', space=vmem, size = 0x9000, scoped, tag = 'internal scratch']
  %s0 = inlined_call_operand.hbm [shape: f32[2,256], index: 0, kind: input, shape index: {}]
  %s1 = inlined_call_operand.hbm [shape: f32[2,768], index: 1, kind: input, shape index: {}]
  %s2 = inlined_call_operand.hbm [shape: f32[2,768], index: 2, kind: input, shape index: {}]
  %s3 = inlined_call_operand.hbm [shape: f32[2,768], index: 3, kind: output, shape index: {0}]
  %s4 = inlined_call_operand.hbm [shape: f32[2,768], index: 4, kind: output, shape index: {1}]
  %5 = xla_tuple %s3, %s4
  %s6 = sld [smem:[#allocation0]]
  $region65: #{tpu_custom_call.1} parent=0
    _
  %s8 = ssub.s32 1, %s6
  %s9 = scalar_select 0, %s8, %s6
  $region1: #{tpu_custom_call.1} parent=0
    #allocation2 [shape = 'u8[2048]{0}', space=vmem, size = 0x800, scoped, tag = 'input window, operand 0, single buffered']
    #allocation3 [shape = 's32[2]{0}', space=sflag, size = 0x8, scoped, tag = 'scoped memory for tpu_custom_call.1']
    #allocation4 [shape = 's32[2]{0}', space=sflag, size = 0x8, scoped, tag = 'scoped memory for tpu_custom_call.1']
    #allocation5 [shape = 'u8[4096]{0}', space=vmem, size = 0x1000, scoped, tag = 'input window, operand 1']
    #allocation6 [shape = 's32[2]{0}', space=sflag, size = 0x8, scoped, tag = 'scoped memory for tpu_custom_call.1']
    #allocation7 [shape = 'u8[4096]{0}', space=vmem, size = 0x1000, scoped, tag = 'input window, operand 2']
    #allocation8 [shape = 'u8[4096]{0}', space=vmem, size = 0x1000, scoped, tag = 'output window, operand 0']
    #allocation9 [shape = 'u8[4096]{0}', space=vmem, size = 0x1000, scoped, tag = 'output window, operand 1']
    #allocation10 [shape = 's32[2]{0}', space=sflag, size = 0x8, scoped, tag = 'scoped memory for tpu_custom_call.1']
    %10 = vsyncpa [#allocation3], 0
    %11 = vsyncpa [#allocation6], 0
    %s12 = scalar_lea.sflag [#allocation6], 1
    %13 = vsyncpa %s12, 0
    %14 = vsyncpa [#allocation4], 0
    %s15 = scalar_lea.sflag [#allocation4], 1
    %16 = vsyncpa %s15, 0
    %17 = vsyncpa [#allocation10], 0
    %s18 = scalar_lea.sflag [#allocation10], 1
    %19 = vsyncpa %s18, 0
    loop: start=0, step=1, limit=5
    $region2: #{tpu_custom_call.1} parent=1 // loop_pre_header
      _
    $region3: #{tpu_custom_call.1} parent=1 // loop_header
      %s21 = sphi 0, %s25
      %p22 = scmp.ge.s32.totalorder %s21, 5
      %s28 = sphi 0, %s40
      %s29 = sphi 0, %s36
      %s30 = sphi 0, %s28
      %s31 = sphi 0, %s29
      %s32 = sphi 0, %s30
      %s33 = sphi 0, %s31
      %s43 = sphi 0, %s45
      %s46 = sphi 0, %s43
      %s47 = sphi 0, %s46
      %s63 = sphi 0, %s47
      %s71 = sphi 0, %s73
      %s74 = sphi 0, %s71
      %s75 = sphi 0, %s74
      %s91 = sphi 0, %s75
      %s99 = sphi 0, %s101
      %s102 = sphi 0, %s99
      %s103 = sphi 0, %s102
      %s119 = sphi 0, %s103
      %s127 = sphi 0, %s129
      %s130 = sphi 0, %s127
      %s131 = sphi 0, %s130
      %s147 = sphi 0, %s131
      %s155 = sphi 0, %s157
      %s158 = sphi 0, %s155
      %s159 = sphi 0, %s158
      %s175 = sphi 0, %s159
    $region4: #{tpu_custom_call.1} parent=1 // loop_header_branch
      %24 = sbr.rel (%p22) target = $region8
    $region5: #{tpu_custom_call.1} parent=1 // loop_body
      %s26 = ssub.s32 %s21, 1
      %s27 = ssub.s32 %s21, 2
      %s34 = sadd.s32 1, %s29
      %p35 = scmp.ge.s32.totalorder %s34, 3
      %s36 = scalar_select %p35, 0, %s34
      %s37 = sadd.s32 1, %s28
      %s38 = scalar_select %p35, %s37, %s28
      %p39 = scmp.ge.s32.totalorder %s38, 1
      %s40 = scalar_select %p39, 0, %s38
      %s41 = ssub.s32 %s28, %s40
      %p42 = scmp.eq.s32.totalorder %s41, 0
      %s44 = sadd.s32 %s43, 1
      %s45 = scalar_select %p42, %s43, %s44
      %p48 = pneg %p42
      %p49 = scmp.eq.s32.totalorder %s21, 2
      %p50 = por %p48, %p49
      %p51 = scmp.ne.s32.totalorder %s43, %s46
      %p52 = scmp.eq.s32.totalorder %s21, 0
      %p53 = por %p51, %p52
      %p54 = scmp.ne.s32.totalorder %s43, %s46
      %p55 = scmp.eq.s32.totalorder %s26, 2
      %p56 = por %p54, %p55
      %p57 = scmp.ne.s32.totalorder %s46, %s47
      %p58 = scmp.eq.s32.totalorder %s26, 0
      %p59 = por %p57, %p58
      %p60 = scmp.ne.s32.totalorder %s46, %s47
      %p61 = scmp.eq.s32.totalorder %s27, 2
      %p62 = por %p60, %p61
      %p64 = scmp.ne.s32.totalorder %s47, %s63
      %p65 = scmp.eq.s32.totalorder %s27, 0
      %p66 = por %p64, %p65
      %s67 = ssub.s32 %s28, %s40
      %s68 = ssub.s32 %s29, %s36
      %s69 = sor.u32 %s67, %s68
      %p70 = scmp.eq.s32.totalorder %s69, 0
      %s72 = sadd.s32 %s71, 1
      %s73 = scalar_select %p70, %s71, %s72
      %p76 = pneg %p70
      %p77 = scmp.eq.s32.totalorder %s21, 2
      %p78 = por %p76, %p77
      %p79 = scmp.ne.s32.totalorder %s71, %s74
      %p80 = scmp.eq.s32.totalorder %s21, 0
      %p81 = por %p79, %p80
      %p82 = scmp.ne.s32.totalorder %s71, %s74
      %p83 = scmp.eq.s32.totalorder %s26, 2
      %p84 = por %p82, %p83
      %p85 = scmp.ne.s32.totalorder %s74, %s75
      %p86 = scmp.eq.s32.totalorder %s26, 0
      %p87 = por %p85, %p86
      %p88 = scmp.ne.s32.totalorder %s74, %s75
      %p89 = scmp.eq.s32.totalorder %s27, 2
      %p90 = por %p88, %p89
      %p92 = scmp.ne.s32.totalorder %s75, %s91
      %p93 = scmp.eq.s32.totalorder %s27, 0
      %p94 = por %p92, %p93
      %s95 = ssub.s32 %s28, %s40
      %s96 = ssub.s32 %s29, %s36
      %s97 = sor.u32 %s95, %s96
      %p98 = scmp.eq.s32.totalorder %s97, 0
      %s100 = sadd.s32 %s99, 1
      %s101 = scalar_select %p98, %s99, %s100
      %p104 = pneg %p98
      %p105 = scmp.eq.s32.totalorder %s21, 2
      %p106 = por %p104, %p105
      %p107 = scmp.ne.s32.totalorder %s99, %s102
      %p108 = scmp.eq.s32.totalorder %s21, 0
      %p109 = por %p107, %p108
      %p110 = scmp.ne.s32.totalorder %s99, %s102
      %p111 = scmp.eq.s32.totalorder %s26, 2
      %p112 = por %p110, %p111
      %p113 = scmp.ne.s32.totalorder %s102, %s103
      %p114 = scmp.eq.s32.totalorder %s26, 0
      %p115 = por %p113, %p114
      %p116 = scmp.ne.s32.totalorder %s102, %s103
      %p117 = scmp.eq.s32.totalorder %s27, 2
      %p118 = por %p116, %p117
      %p120 = scmp.ne.s32.totalorder %s103, %s119
      %p121 = scmp.eq.s32.totalorder %s27, 0
      %p122 = por %p120, %p121
      %s123 = ssub.s32 %s28, %s40
      %s124 = ssub.s32 %s29, %s36
      %s125 = sor.u32 %s123, %s124
      %p126 = scmp.eq.s32.totalorder %s125, 0
      %s128 = sadd.s32 %s127, 1
      %s129 = scalar_select %p126, %s127, %s128
      %p132 = pneg %p126
      %p133 = scmp.eq.s32.totalorder %s21, 2
      %p134 = por %p132, %p133
      %p135 = scmp.ne.s32.totalorder %s127, %s130
      %p136 = scmp.eq.s32.totalorder %s21, 0
      %p137 = por %p135, %p136
      %p138 = scmp.ne.s32.totalorder %s127, %s130
      %p139 = scmp.eq.s32.totalorder %s26, 2
      %p140 = por %p138, %p139
      %p141 = scmp.ne.s32.totalorder %s130, %s131
      %p142 = scmp.eq.s32.totalorder %s26, 0
      %p143 = por %p141, %p142
      %p144 = scmp.ne.s32.totalorder %s130, %s131
      %p145 = scmp.eq.s32.totalorder %s27, 2
      %p146 = por %p144, %p145
      %p148 = scmp.ne.s32.totalorder %s131, %s147
      %p149 = scmp.eq.s32.totalorder %s27, 0
      %p150 = por %p148, %p149
      %s151 = ssub.s32 %s28, %s40
      %s152 = ssub.s32 %s29, %s36
      %s153 = sor.u32 %s151, %s152
      %p154 = scmp.eq.s32.totalorder %s153, 0
      %s156 = sadd.s32 %s155, 1
      %s157 = scalar_select %p154, %s155, %s156
      %p160 = pneg %p154
      %p161 = scmp.eq.s32.totalorder %s21, 2
      %p162 = por %p160, %p161
      %p163 = scmp.ne.s32.totalorder %s155, %s158
      %p164 = scmp.eq.s32.totalorder %s21, 0
      %p165 = por %p163, %p164
      %p166 = scmp.ne.s32.totalorder %s155, %s158
      %p167 = scmp.eq.s32.totalorder %s26, 2
      %p168 = por %p166, %p167
      %p169 = scmp.ne.s32.totalorder %s158, %s159
      %p170 = scmp.eq.s32.totalorder %s26, 0
      %p171 = por %p169, %p170
      %p172 = scmp.ne.s32.totalorder %s158, %s159
      %p173 = scmp.eq.s32.totalorder %s27, 2
      %p174 = por %p172, %p173
      %p176 = scmp.ne.s32.totalorder %s159, %s175
      %p177 = scmp.eq.s32.totalorder %s27, 0
      %p178 = por %p176, %p177
      %p179 = scmp.le.s32.totalorder 1, %s21
      %p180 = scmp.lt.s32.totalorder %s21, 4
      %p181 = pnand %p179, %p180
      %p182 = pneg %p181
      // Predicated region
      $region9: #{tpu_custom_call.1} parent=5 // pred_check
        _
      $region10: #{tpu_custom_call.1} parent=5 // pred_check_branch
        %184 = sbr.rel (%p181) target = $region12
      $region11: #{tpu_custom_call.1} parent=5 // pred_region
        %s185 = ssub.s32 %s21, 1
        // Predicated region
        $region13: #{tpu_custom_call.1} parent=11 // pred_check
          %p186 = pneg %p59
        $region14: #{tpu_custom_call.1} parent=11 // pred_check_branch
          %188 = sbr.rel (%p186) target = $region16
        $region15: #{tpu_custom_call.1} parent=11 // pred_region
          %190 = vsyncadd [#allocation3], 0
          %s191 = smul.addr %s30, 2
          %s192 = smul.addr %s191, 2
          %s193 = scalar_lea.hbm %s0, %s192
          %s195 = sshll.u32 %s193, 4
          %s196 = int_to_ptr.hbm [resolvable:$true] %s195
          %s197 = sshll.u32 [#allocation2], 4
          %s198 = int_to_ptr.vmem [resolvable:$true] %s197
          %200 = dma.hbm_to_vmem [thread:$0]  %s196, 64, %s198, [#allocation3]
        $region16: #{tpu_custom_call.1} parent=11 // pred_fallthru
          _
      $region12: #{tpu_custom_call.1} parent=5 // pred_fallthru
        _
      %p201 = scmp.lt.s32.totalorder %s21, 3
      // Predicated region
      $region17: #{tpu_custom_call.1} parent=5 // pred_check
        %p202 = pneg %p201
      $region18: #{tpu_custom_call.1} parent=5 // pred_check_branch
        %204 = sbr.rel (%p202) target = $region20
      $region19: #{tpu_custom_call.1} parent=5 // pred_region
        // Predicated region
        $region21: #{tpu_custom_call.1} parent=19 // pred_check
          %p205 = pneg %p81
        $region22: #{tpu_custom_call.1} parent=19 // pred_check_branch
          %207 = sbr.rel (%p205) target = $region24
        $region23: #{tpu_custom_call.1} parent=19 // pred_region
          %s208 = sand.u32 %s21, 1
          %s209 = scalar_lea.sflag [#allocation6], %s208
          %s210 = sand.u32 %s71, 1
          %s211 = smul.addr %s210, 4
          %s212 = scalar_lea.vmem [#allocation5], %s211
          %s213 = smul.u32 2, %s29
          %215 = vsyncadd %s209, 0
          %s216 = smul.addr %s28, 6
          %s217 = sadd.s32 %s213, %s216
          %s218 = smul.addr %s217, 2
          %s219 = scalar_lea.hbm %s1, %s218
          %s221 = sshll.u32 %s219, 4
          %s222 = int_to_ptr.hbm [resolvable:$true] %s221
          %s223 = sshll.u32 %s212, 4
          %s224 = int_to_ptr.vmem [resolvable:$true] %s223
          %226 = dma.hbm_to_vmem [thread:$0]  %s222, 64, %s224, %s209
        $region24: #{tpu_custom_call.1} parent=19 // pred_fallthru
          _
        // Predicated region
        $region25: #{tpu_custom_call.1} parent=19 // pred_check
          %p227 = pneg %p109
        $region26: #{tpu_custom_call.1} parent=19 // pred_check_branch
          %229 = sbr.rel (%p227) target = $region28
        $region27: #{tpu_custom_call.1} parent=19 // pred_region
          %s230 = sand.u32 %s21, 1
          %s231 = scalar_lea.sflag [#allocation6], %s230
          %s232 = sand.u32 %s99, 1
          %s233 = smul.addr %s232, 4
          %s234 = scalar_lea.vmem [#allocation7], %s233
          %s235 = smul.u32 2, %s29
          %237 = vsyncadd %s231, 0
          %s238 = smul.addr %s28, 6
          %s239 = sadd.s32 %s235, %s238
          %s240 = smul.addr %s239, 2
          %s241 = scalar_lea.hbm %s2, %s240
          %s243 = sshll.u32 %s241, 4
          %s244 = int_to_ptr.hbm [resolvable:$true] %s243
          %s245 = sshll.u32 %s234, 4
          %s246 = int_to_ptr.vmem [resolvable:$true] %s245
          %248 = dma.hbm_to_vmem [thread:$0]  %s244, 64, %s246, %s231
        $region28: #{tpu_custom_call.1} parent=19 // pred_fallthru
          _
      $region20: #{tpu_custom_call.1} parent=5 // pred_fallthru
        _
      %p249 = scmp.le.s32.totalorder 1, %s21
      %p250 = scmp.lt.s32.totalorder %s21, 4
      %p251 = pnand %p249, %p250
      %p252 = pneg %p251
      // Predicated region
      $region29: #{tpu_custom_call.1} parent=5 // pred_check
        _
      $region30: #{tpu_custom_call.1} parent=5 // pred_check_branch
        %254 = sbr.rel (%p251) target = $region32
      $region31: #{tpu_custom_call.1} parent=5 // pred_region
        %s255 = ssub.s32 %s21, 1
        // Predicated region
        $region33: #{tpu_custom_call.1} parent=31 // pred_check
          %p256 = pneg %p59
        $region34: #{tpu_custom_call.1} parent=31 // pred_check_branch
          %258 = sbr.rel (%p256) target = $region36
        $region35: #{tpu_custom_call.1} parent=31 // pred_region
          %260 = dma.done [#allocation3], 64
        $region36: #{tpu_custom_call.1} parent=31 // pred_fallthru
          _
        %s261 = sand.u32 %s26, 1
        %s262 = scalar_lea.sflag [#allocation6], %s261
        %s263 = sand.u32 %s74, 1
        %s264 = smul.addr %s263, 4
        %s265 = scalar_lea.vmem [#allocation5], %s264
        // Predicated region
        $region37: #{tpu_custom_call.1} parent=31 // pred_check
          %p266 = pneg %p87
        $region38: #{tpu_custom_call.1} parent=31 // pred_check_branch
          %268 = sbr.rel (%p266) target = $region40
        $region39: #{tpu_custom_call.1} parent=31 // pred_region
          %270 = dma.done %s262, 64
        $region40: #{tpu_custom_call.1} parent=31 // pred_fallthru
          _
        %s271 = sand.u32 %s26, 1
        %s272 = scalar_lea.sflag [#allocation6], %s271
        %s273 = sand.u32 %s102, 1
        %s274 = smul.addr %s273, 4
        %s275 = scalar_lea.vmem [#allocation7], %s274
        // Predicated region
        $region41: #{tpu_custom_call.1} parent=31 // pred_check
          %p276 = pneg %p115
        $region42: #{tpu_custom_call.1} parent=31 // pred_check_branch
          %278 = sbr.rel (%p276) target = $region44
        $region43: #{tpu_custom_call.1} parent=31 // pred_region
          %280 = dma.done %s272, 64
        $region44: #{tpu_custom_call.1} parent=31 // pred_fallthru
          _
        %p281 = pneg %p59
        %p282 = pneg %p56
        %s283 = sand.u32 %s26, 1
        %s284 = scalar_lea.sflag [#allocation6], %s283
        %s285 = sand.u32 %s74, 1
        %s286 = smul.addr %s285, 4
        %s287 = scalar_lea.vmem [#allocation5], %s286
        %p288 = pneg %p87
        %p289 = pneg %p84
        %s290 = sand.u32 %s26, 1
        %s291 = scalar_lea.sflag [#allocation6], %s290
        %s292 = sand.u32 %s102, 1
        %s293 = smul.addr %s292, 4
        %s294 = scalar_lea.vmem [#allocation7], %s293
        %p295 = pneg %p115
        %p296 = pneg %p112
        %p297 = pneg %p143
        %p298 = pneg %p140
        %s299 = sand.u32 %s130, 1
        %s300 = scalar_lea.sflag [#allocation4], %s299
        %s301 = sand.u32 %s130, 1
        %s302 = smul.addr %s301, 4
        %s303 = scalar_lea.vmem [#allocation8], %s302
        %p304 = pneg %p171
        %p305 = pneg %p168
        %s306 = sand.u32 %s158, 1
        %s307 = scalar_lea.sflag [#allocation10], %s306
        %s308 = sand.u32 %s158, 1
        %s309 = smul.addr %s308, 4
        %s310 = scalar_lea.vmem [#allocation9], %s309
        %s311 = smul.u32 2, %s31
        %s312 = smul.u32 2, %s31
        %s313 = smul.u32 2, %s31
        %s314 = smul.u32 2, %s31
        %v315 = vld [vmem:[#allocation2] sm:$0xf]
        %v316 = vld [vmem:[%s265] sm:$0xf]
        %v317 = vadd.f32 %v316, %v315
        %318 = vst [vmem:[%s303] sm:$0xf] %v317
        %v319 = vld [vmem:[%s275] sm:$0xf]
        %v320 = vadd.f32 %v319, %v315
        %321 = vst [vmem:[%s310] sm:$0xf] %v320
        %s322 = sand.u32 %s130, 1
        %s323 = scalar_lea.sflag [#allocation4], %s322
        %s324 = sand.u32 %s130, 1
        %s325 = smul.addr %s324, 4
        %s326 = scalar_lea.vmem [#allocation8], %s325
        %s327 = sand.u32 %s158, 1
        %s328 = scalar_lea.sflag [#allocation10], %s327
        %s329 = sand.u32 %s158, 1
        %s330 = smul.addr %s329, 4
        %s331 = scalar_lea.vmem [#allocation9], %s330
        // Predicated region
        $region45: #{tpu_custom_call.1} parent=31 // pred_check
          %p332 = pneg %p140
        $region46: #{tpu_custom_call.1} parent=31 // pred_check_branch
          %334 = sbr.rel (%p332) target = $region48
        $region47: #{tpu_custom_call.1} parent=31 // pred_region
          %s335 = smul.u32 2, %s31
          %337 = vsyncadd %s323, 0
          %s338 = smul.addr %s30, 6
          %s339 = sadd.s32 %s335, %s338
          %s340 = smul.addr %s339, 2
          %s341 = scalar_lea.hbm %s3, %s340
          %s343 = sshll.u32 %s326, 4
          %s344 = int_to_ptr.vmem [resolvable:$true] %s343
          %s345 = sshll.u32 %s341, 4
          %s346 = int_to_ptr.hbm [resolvable:$true] %s345
          %348 = dma.vmem_to_hbm [thread:$0]  %s344, 64, %s346, %s323
        $region48: #{tpu_custom_call.1} parent=31 // pred_fallthru
          _
        // Predicated region
        $region49: #{tpu_custom_call.1} parent=31 // pred_check
          %p349 = pneg %p168
        $region50: #{tpu_custom_call.1} parent=31 // pred_check_branch
          %351 = sbr.rel (%p349) target = $region52
        $region51: #{tpu_custom_call.1} parent=31 // pred_region
          %s352 = smul.u32 2, %s31
          %354 = vsyncadd %s328, 0
          %s355 = smul.addr %s30, 6
          %s356 = sadd.s32 %s352, %s355
          %s357 = smul.addr %s356, 2
          %s358 = scalar_lea.hbm %s4, %s357
          %s360 = sshll.u32 %s331, 4
          %s361 = int_to_ptr.vmem [resolvable:$true] %s360
          %s362 = sshll.u32 %s358, 4
          %s363 = int_to_ptr.hbm [resolvable:$true] %s362
          %365 = dma.vmem_to_hbm [thread:$0]  %s361, 64, %s363, %s328
        $region52: #{tpu_custom_call.1} parent=31 // pred_fallthru
          _
      $region32: #{tpu_custom_call.1} parent=5 // pred_fallthru
        _
      %p366 = scmp.le.s32.totalorder 2, %s21
      // Predicated region
      $region53: #{tpu_custom_call.1} parent=5 // pred_check
        %p367 = pneg %p366
      $region54: #{tpu_custom_call.1} parent=5 // pred_check_branch
        %369 = sbr.rel (%p367) target = $region56
      $region55: #{tpu_custom_call.1} parent=5 // pred_region
        %s370 = ssub.s32 %s21, 2
        // Predicated region
        $region57: #{tpu_custom_call.1} parent=55 // pred_check
          %p371 = pneg %p146
        $region58: #{tpu_custom_call.1} parent=55 // pred_check_branch
          %373 = sbr.rel (%p371) target = $region60
        $region59: #{tpu_custom_call.1} parent=55 // pred_region
          %s374 = sand.u32 %s131, 1
          %s375 = scalar_lea.sflag [#allocation4], %s374
          %s376 = sand.u32 %s131, 1
          %s377 = smul.addr %s376, 4
          %s378 = scalar_lea.vmem [#allocation8], %s377
          %380 = dma.done %s375, 64
        $region60: #{tpu_custom_call.1} parent=55 // pred_fallthru
          _
        // Predicated region
        $region61: #{tpu_custom_call.1} parent=55 // pred_check
          %p381 = pneg %p174
        $region62: #{tpu_custom_call.1} parent=55 // pred_check_branch
          %383 = sbr.rel (%p381) target = $region64
        $region63: #{tpu_custom_call.1} parent=55 // pred_region
          %s384 = sand.u32 %s159, 1
          %s385 = scalar_lea.sflag [#allocation10], %s384
          %s386 = sand.u32 %s159, 1
          %s387 = smul.addr %s386, 4
          %s388 = scalar_lea.vmem [#allocation9], %s387
          %390 = dma.done %s385, 64
        $region64: #{tpu_custom_call.1} parent=55 // pred_fallthru
          _
      $region56: #{tpu_custom_call.1} parent=5 // pred_fallthru
        _
    $region6: #{tpu_custom_call.1} parent=1 // loop_footer
      %s25 = sadd.s32 1, %s21
    $region7: #{tpu_custom_call.1} parent=1 // loop_footer_branch
      %20 = sbr.rel target = $region3
    $region8: #{tpu_custom_call.1} parent=1 // loop_exit
      _
    %391 = vsyncpa [#allocation3], 1
    %s392 = scalar_lea.sflag [#allocation3], 1
    %393 = vsyncpa %s392, 1
    %394 = vsyncpa [#allocation6], 1
    %s395 = scalar_lea.sflag [#allocation6], 1
    %396 = vsyncpa %s395, 1
    %397 = vsyncpa [#allocation4], 1
    %s398 = scalar_lea.sflag [#allocation4], 1
    %399 = vsyncpa %s398, 1
    %400 = vsyncpa [#allocation10], 1
    %s401 = scalar_lea.sflag [#allocation10], 1
    %402 = vsyncpa %s401, 1

</llo_original>
